<compile_context>
chip_gen: v6e
topology: v6e:2x2x1
jax: 0.10.0
libtpu: 0.0.40
codegen_flags: <defaults>
</compile_context>

<pallas_src>
import jax
import jax.numpy as jnp
from jax import lax
from jax.experimental import pallas as pl
from jax.experimental.pallas import tpu as pltpu


def make_divisible(v, divisor, min_value=None):
    if min_value is None:
        min_value = divisor
    new_v = max(min_value, int(v + divisor / 2) // divisor * divisor)
    if new_v < 0.9 * v:
        new_v += divisor
    return new_v


def adjust_channels(channels, width_mult, min_value=None):
    return make_divisible(channels * width_mult, 8, min_value)


def _round_up(v, m):
    return ((v + m - 1) // m) * m


def _default_images_per_step(N):
    """v7x has 2 TensorCores/chip -> keep >=2 parallel grid steps; single-TC
    chips (v5e/v6e) prefer one fat step (grid is a serial loop there)."""
    try:
        kind = jax.devices()[0].device_kind.lower()
    except Exception:
        return 1
    if "v7" in kind or "7x" in kind:
        return max(1, N // 2)
    return N


# ----------------------------- Pallas kernel ---------------------------------
def _make_kernel(H, W, pad, k, ips, Cout_p, use_res, compute_dtype):
    """Kernel closure over static shape/config parameters.

    Refs per grid step (ips images):
      x_ref  : (ips, Hp, W*Cin_p)       height-padded activation, channels-last,
                                        channels zero-padded to Cin_p, lane-dense
      w1_ref : (k*W*Cin_p, W*Cexp)      fused banded 3x3-conv weight, BN1 scale folded
      b1_ref : (1, W*Cexp)              BN1 shift, tiled over w
      w2_ref : (W*Cexp, W*Cout_p)       block-diag 1x1-conv weight, BN2 scale folded,
                                        output channels zero-padded to Cout_p
      b2_ref : (1, W*Cout_p)            BN2 shift (zero in padded channels)
      o_ref  : (ips, H, W*Cout_p)       output, channels-last, 128-lane dense
    """

    def kernel(x_ref, w1_ref, b1_ref, w2_ref, b2_ref, o_ref):
        # LHS: per image, the k height-shifted row windows laid side-by-side along the
        # contraction axis -> ONE fused MXU GEMM instead of k pushes + VPU adds.
        per_img = [
            jnp.concatenate([x_ref[b, kh:kh + H, :] for kh in range(k)], axis=1)
            for b in range(ips)
        ]
        lhs = per_img[0] if ips == 1 else jnp.concatenate(per_img, axis=0)

        # 3x3 fused-expand conv: (ips*H, k*W*Cin_p) x (k*W*Cin_p, W*Cexp), f32 acc.
        h = jnp.dot(lhs, w1_ref[...], preferred_element_type=jnp.float32)
        # BN1 (eval): scale already folded into w1 -> only the shift remains.
        h = h + b1_ref[...]
        # SiLU (sigmoid lowers to the EUP -> free bundle slot).
        h = h * jax.nn.sigmoid(h)

        # 1x1 projection (block-diagonal GEMM), BN2 scale folded in.
        y = jnp.dot(h.astype(compute_dtype), w2_ref[...],
                    preferred_element_type=jnp.float32)
        y = y + b2_ref[...]

        if use_res:
            # Residual = centre tap of the height-padded input (Cin == Cout, stride 1,
            # matching zero-padded channel layout); lane-aligned slice, no extra DMA.
            taps = [x_ref[b, pad:pad + H, :] for b in range(ips)]
            res = taps[0] if ips == 1 else jnp.concatenate(taps, axis=0)
            y = y + res.astype(jnp.float32)

        o_ref[...] = y.reshape(ips, H, W * Cout_p).astype(o_ref.dtype)

    return kernel


# ------------------------------- wrapper --------------------------------------
def fused_mbconv_pallas(x_nchw, params, *, kernel=3, stride=1,
                        compute_dtype=jnp.float32, images_per_step=None):
    N, Cin, H, W = x_nchw.shape
    w1 = params["w1"]                       # (Cexp, Cin, k, k)   PyTorch OIHW
    w2 = params["w2"]                       # (Cout, Cexp, 1, 1)
    Cexp, Cout = w1.shape[0], w2.shape[0]
    eps = 1e-5

    assert stride == 1, "only stride=1 implemented"          # TODO(synk): stride=2
    assert kernel % 2 == 1, "odd kernel expected"
    assert Cexp != Cin, "expand_ratio==1 path not implemented"  # TODO(synk)
    use_res = (stride == 1) and (Cin == Cout)

    # Channel padding for lane density (128-wide stores / aligned residual slice).
    Cin_p = _round_up(Cin, 8)
    Cout_p = _round_up(Cout, 8)
    if use_res:
        assert Cin_p == Cout_p, "residual layout requires matching padded channels"

    # Fold eval-mode BatchNorm into per-channel scale/shift (parameter glue).
    s1 = params["g1"] / jnp.sqrt(params["v1"] + eps)
    b1 = params["b1"] - params["m1"] * s1
    s2 = params["g2"] / jnp.sqrt(params["v2"] + eps)
    b2 = params["b2"] - params["m2"] * s2

    pad = (kernel - 1) // 2
    Hp = H + 2 * pad

    # Activations: NCHW -> NHWC -> pad height + channels -> (N, Hp, W*Cin_p).
    # Width padding is folded into the banded weights so the layout stays 128-lane dense.
    x_nhwc = jnp.transpose(x_nchw, (0, 2, 3, 1))
    xp = jnp.pad(x_nhwc, ((0, 0), (pad, pad), (0, 0), (0, Cin_p - Cin)))
    xp2 = xp.reshape(N, Hp, W * Cin_p).astype(compute_dtype)

    # 3x3 conv -> fused banded GEMM weight with BN1 scale folded in:
    #   band_kh[win*Cin_p + c, w*Cexp + co] = sum_kw [win == w + kw - pad] * w1[co,c,kh,kw]*s1[co]
    # stacked over kh along the contraction axis -> (k*W*Cin_p, W*Cexp).
    w1_g = jnp.transpose(w1, (2, 3, 1, 0)) * s1[None, None, None, :]   # (k,k,Cin,Cexp)
    w1_gp = jnp.pad(w1_g, ((0, 0), (0, 0), (0, Cin_p - Cin), (0, 0)))  # (k,k,Cin_p,Cexp)
    bands = []
    for kh in range(kernel):
        mat = jnp.zeros((W * Cin_p, W * Cexp), jnp.float32)
        for kw in range(kernel):
            shift = jnp.eye(W, W, k=pad - kw, dtype=jnp.float32)       # win == w + kw - pad
            mat = mat + jnp.kron(shift, w1_gp[kh, kw])
        bands.append(mat)
    w1_full = jnp.concatenate(bands, axis=0).astype(compute_dtype)     # (k*W*Cin_p, W*Cexp)

    # 1x1 projection -> block-diagonal GEMM weight, BN2 scale folded, Cout padded to 8.
    w2s = (w2[:, :, 0, 0] * s2[:, None]).T                             # (Cexp, Cout)
    w2s_p = jnp.pad(w2s, ((0, 0), (0, Cout_p - Cout)))                 # (Cexp, Cout_p)
    w2_bd = jnp.kron(jnp.eye(W, dtype=jnp.float32), w2s_p).astype(compute_dtype)

    b1_t = jnp.tile(b1, W)[None, :].astype(jnp.float32)                # (1, W*Cexp)
    b2_p = jnp.pad(b2, (0, Cout_p - Cout))
    b2_t = jnp.tile(b2_p, W)[None, :].astype(jnp.float32)              # (1, W*Cout_p)

    # Images per grid step (M batching).
    if images_per_step is None:
        images_per_step = _default_images_per_step(N)
    ips = max(1, min(int(images_per_step), N))
    while N % ips:
        ips -= 1
    grid = (N // ips,)

    kern = _make_kernel(H=H, W=W, pad=pad, k=kernel, ips=ips, Cout_p=Cout_p,
                        use_res=use_res, compute_dtype=compute_dtype)

    # Advisory cost estimate so XLA can overlap this small call with surrounding glue.
    K1 = kernel * W * Cin_p
    itemsize = jnp.dtype(compute_dtype).itemsize
    flops = 2 * N * H * (K1 * W * Cexp + W * Cexp * W * Cout_p)
    transcendentals = N * H * W * Cexp
    bytes_accessed = (N * Hp * W * Cin_p * itemsize          # activations
                      + K1 * W * Cexp * itemsize             # banded 3x3 weight
                      + W * Cexp * W * Cout_p * itemsize     # block-diag 1x1 weight
                      + (W * Cexp + W * Cout_p) * 4          # BN shifts
                      + N * H * W * Cout_p * 4)              # output

    out = pl.pallas_call(
        kern,
        out_shape=jax.ShapeDtypeStruct((N, H, W * Cout_p), jnp.float32),
        grid_spec=pltpu.PrefetchScalarGridSpec(
            num_scalar_prefetch=0,
            grid=grid,                                        # ips images / step
            in_specs=[
                # height-padded activations for this step's images
                pl.BlockSpec((ips, Hp, W * Cin_p), lambda n: (n, 0, 0)),
                # grid-invariant weights / shifts (DMA'd once, stay resident)
                pl.BlockSpec((kernel * W * Cin_p, W * Cexp), lambda n: (0, 0)),
                pl.BlockSpec((1, W * Cexp), lambda n: (0, 0)),
                pl.BlockSpec((W * Cexp, W * Cout_p), lambda n: (0, 0)),
                pl.BlockSpec((1, W * Cout_p), lambda n: (0, 0)),
            ],
            out_specs=pl.BlockSpec((ips, H, W * Cout_p), lambda n: (n, 0, 0)),
        ),
        compiler_params=pltpu.CompilerParams(
            dimension_semantics=("parallel",)),
        cost_estimate=pl.CostEstimate(flops=flops,
                                      transcendentals=transcendentals,
                                      bytes_accessed=bytes_accessed),
    )(xp2, w1_full, b1_t, w2_bd, b2_t)

    out_nhwc = out.reshape(N, H, W, Cout_p)[..., :Cout]       # drop channel padding
    return jnp.transpose(out_nhwc, (0, 3, 1, 2))              # back to NCHW


# --------------------------- pure-JAX reference --------------------------------
def fused_mbconv_ref(x, params, kernel=3):
    eps = 1e-5

    def bn(y, g, b, m, v):
        inv = (g / jnp.sqrt(v + eps))[None, :, None, None]
        return (y - m[None, :, None, None]) * inv + b[None, :, None, None]

    pad = (kernel - 1) // 2
    y = lax.conv_general_dilated(x, params["w1"], (1, 1), [(pad, pad), (pad, pad)],
                                 dimension_numbers=("NCHW", "OIHW", "NCHW"))
    y = bn(y, params["g1"], params["b1"], params["m1"], params["v1"])
    y = y * jax.nn.sigmoid(y)
    y = lax.conv_general_dilated(y, params["w2"], (1, 1), [(0, 0), (0, 0)],
                                 dimension_numbers=("NCHW", "OIHW", "NCHW"))
    y = bn(y, params["g2"], params["b2"], params["m2"], params["v2"])
    return y + x


if __name__ == "__main__":
    cnf = dict(input_channels=4, out_channels=4, expand_ratio=4.0, kernel=3, stride=1)
    Cin, Cout = cnf["input_channels"], cnf["out_channels"]
    Cexp = adjust_channels(Cin, cnf["expand_ratio"])            # -> 16
    N, H, W = 2, 16, 16

    key = jax.random.PRNGKey(0)
    ks = jax.random.split(key, 12)
    params = {
        "w1": jax.random.normal(ks[0], (Cexp, Cin, cnf["kernel"], cnf["kernel"]), jnp.float32) * 0.1,
        "g1": jax.random.uniform(ks[1], (Cexp,), jnp.float32, 0.5, 1.5),
        "b1": jax.random.normal(ks[2], (Cexp,), jnp.float32) * 0.1,
        "m1": jax.random.normal(ks[3], (Cexp,), jnp.float32) * 0.1,
        "v1": jax.random.uniform(ks[4], (Cexp,), jnp.float32, 0.5, 1.5),
        "w2": jax.random.normal(ks[5], (Cout, Cexp, 1, 1), jnp.float32) * 0.1,
        "g2": jax.random.uniform(ks[6], (Cout,), jnp.float32, 0.5, 1.5),
        "b2": jax.random.normal(ks[7], (Cout,), jnp.float32) * 0.1,
        "m2": jax.random.normal(ks[8], (Cout,), jnp.float32) * 0.1,
        "v2": jax.random.uniform(ks[9], (Cout,), jnp.float32, 0.5, 1.5),
    }
    x = jax.random.normal(ks[10], (N, Cin, H, W), jnp.float32)

    ref = fused_mbconv_ref(x, params, kernel=cnf["kernel"])

    # f32, 1 image/step (v7x-style: both TensorCores get a step) -- tight check.
    out1 = fused_mbconv_pallas(x, params, kernel=cnf["kernel"], stride=cnf["stride"],
                               images_per_step=1)
    # f32, whole batch in one fat step (v5e/v6e-style) -- tight check.
    out2 = fused_mbconv_pallas(x, params, kernel=cnf["kernel"], stride=cnf["stride"],
                               images_per_step=N)
    # bf16 activations/weights, f32 accumulate/epilogue (heuristic grid) -- loose check.
    out_bf = fused_mbconv_pallas(x, params, kernel=cnf["kernel"], stride=cnf["stride"],
                                 compute_dtype=jnp.bfloat16)
    out1, out2, out_bf = jax.block_until_ready((out1, out2, out_bf))

    assert out1.shape == (N, Cout, H, W)
    assert out2.shape == (N, Cout, H, W)
    assert out_bf.shape == (N, Cout, H, W)

    err1 = float(jnp.max(jnp.abs(out1 - ref)))
    err2 = float(jnp.max(jnp.abs(out2 - ref)))
    errb = float(jnp.max(jnp.abs(out_bf - ref)))
    assert jnp.allclose(out1, ref, atol=1e-4, rtol=1e-4), f"f32 ips=1 max abs err {err1}"
    assert jnp.allclose(out2, ref, atol=1e-4, rtol=1e-4), f"f32 ips=N max abs err {err2}"
    assert jnp.allclose(out_bf, ref, atol=5e-2, rtol=5e-2), f"bf16 max abs err {errb}"
    print("KERNEL_OK")
</pallas_src>

<mosaic_0001>
module attributes {stable_mosaic.version = 11 : i64} {
  func.func @kernel(%arg0: i32, %arg1: memref<1x18x128xf32, #tpu.memory_space<vmem>>, %arg2: memref<384x256xf32, #tpu.memory_space<vmem>>, %arg3: memref<1x256xf32, #tpu.memory_space<vmem>>, %arg4: memref<256x128xf32, #tpu.memory_space<vmem>>, %arg5: memref<1x128xf32, #tpu.memory_space<vmem>>, %arg6: memref<1x16x128xf32, #tpu.memory_space<vmem>>) attributes {dimension_semantics = [#tpu.dimension_semantics<parallel>], iteration_bounds = array<i64: 2>, scalar_prefetch = 0 : i64, scratch_operands = 0 : i64, tpu.core_type = #tpu.core_type<tc>, window_params = [{transform_indices = @transform_0, window_bounds = array<i64: 1, 18, 128>}, {pipeline_mode = #tpu.pipeline_mode<synchronous>, transform_indices = @transform_1, window_bounds = array<i64: 384, 256>}, {pipeline_mode = #tpu.pipeline_mode<synchronous>, transform_indices = @transform_2, window_bounds = array<i64: 1, 256>}, {pipeline_mode = #tpu.pipeline_mode<synchronous>, transform_indices = @transform_3, window_bounds = array<i64: 256, 128>}, {pipeline_mode = #tpu.pipeline_mode<synchronous>, transform_indices = @transform_4, window_bounds = array<i64: 1, 128>}, {transform_indices = @transform_5, window_bounds = array<i64: 1, 16, 128>}]} {
    %c0 = arith.constant 0 : index
    %c0_0 = arith.constant 0 : index
    %c0_1 = arith.constant 0 : index
    %0 = vector.load %arg1[%c0, %c0_0, %c0_1] : memref<1x18x128xf32, #tpu.memory_space<vmem>>, vector<1x16x128xf32>
    %1 = vector.shape_cast %0 : vector<1x16x128xf32> to vector<16x128xf32>
    %c0_2 = arith.constant 0 : index
    %c1 = arith.constant 1 : index
    %c0_3 = arith.constant 0 : index
    %2 = vector.load %arg1[%c0_2, %c1, %c0_3] : memref<1x18x128xf32, #tpu.memory_space<vmem>>, vector<1x16x128xf32>
    %3 = vector.shape_cast %2 : vector<1x16x128xf32> to vector<16x128xf32>
    %c0_4 = arith.constant 0 : index
    %c2 = arith.constant 2 : index
    %c0_5 = arith.constant 0 : index
    %4 = vector.load %arg1[%c0_4, %c2, %c0_5] : memref<1x18x128xf32, #tpu.memory_space<vmem>>, vector<1x16x128xf32>
    %5 = vector.shape_cast %4 : vector<1x16x128xf32> to vector<16x128xf32>
    %6 = tpu.concatenate %1, %3, %5 in 1 : vector<16x128xf32>, vector<16x128xf32>, vector<16x128xf32> -> vector<16x384xf32>
    %c0_6 = arith.constant 0 : index
    %c0_7 = arith.constant 0 : index
    %7 = vector.load %arg2[%c0_6, %c0_7] : memref<384x256xf32, #tpu.memory_space<vmem>>, vector<384x256xf32>
    %cst = arith.constant dense<0.000000e+00> : vector<16x256xf32>
    %8 = tpu.matmul %6, %7, %cst {dimension_numbers = #tpu.dot_dimension_numbers<[1], [0], [0], [1], [0, 0, 1, 1], [], []>} : vector<16x384xf32>, vector<384x256xf32>, vector<16x256xf32> -> vector<16x256xf32>
    %c0_8 = arith.constant 0 : index
    %c0_9 = arith.constant 0 : index
    %9 = vector.load %arg3[%c0_8, %c0_9] : memref<1x256xf32, #tpu.memory_space<vmem>>, vector<1x256xf32>
    %10 = vector.broadcast %9 : vector<1x256xf32> to vector<16x256xf32>
    %11 = arith.addf %8, %10 : vector<16x256xf32>
    %12 = arith.negf %11 : vector<16x256xf32>
    %13 = math.exp %12 : vector<16x256xf32>
    %cst_10 = arith.constant 1.000000e+00 : f32
    %14 = vector.broadcast %cst_10 : f32 to vector<16x256xf32>
    %15 = arith.addf %14, %13 : vector<16x256xf32>
    %16 = arith.divf %14, %15 : vector<16x256xf32>
    %17 = arith.mulf %11, %16 : vector<16x256xf32>
    %c0_11 = arith.constant 0 : index
    %c0_12 = arith.constant 0 : index
    %18 = vector.load %arg4[%c0_11, %c0_12] : memref<256x128xf32, #tpu.memory_space<vmem>>, vector<256x128xf32>
    %cst_13 = arith.constant dense<0.000000e+00> : vector<16x128xf32>
    %19 = tpu.matmul %17, %18, %cst_13 {dimension_numbers = #tpu.dot_dimension_numbers<[1], [0], [0], [1], [0, 0, 1, 1], [], []>} : vector<16x256xf32>, vector<256x128xf32>, vector<16x128xf32> -> vector<16x128xf32>
    %c0_14 = arith.constant 0 : index
    %c0_15 = arith.constant 0 : index
    %20 = vector.load %arg5[%c0_14, %c0_15] : memref<1x128xf32, #tpu.memory_space<vmem>>, vector<1x128xf32>
    %21 = vector.broadcast %20 : vector<1x128xf32> to vector<16x128xf32>
    %22 = arith.addf %19, %21 : vector<16x128xf32>
    %c0_16 = arith.constant 0 : index
    %c1_17 = arith.constant 1 : index
    %c0_18 = arith.constant 0 : index
    %23 = vector.load %arg1[%c0_16, %c1_17, %c0_18] : memref<1x18x128xf32, #tpu.memory_space<vmem>>, vector<1x16x128xf32>
    %24 = vector.shape_cast %23 : vector<1x16x128xf32> to vector<16x128xf32>
    %25 = arith.addf %22, %24 : vector<16x128xf32>
    %26 = vector.shape_cast %25 : vector<16x128xf32> to vector<1x16x128xf32>
    %c0_19 = arith.constant 0 : index
    %c0_20 = arith.constant 0 : index
    %c0_21 = arith.constant 0 : index
    %27 = vector.load %arg6[%c0_19, %c0_20, %c0_21] : memref<1x16x128xf32, #tpu.memory_space<vmem>>, vector<1x16x128xf32>
    tpu.vector_store %arg6[%c0_19, %c0_20, %c0_21], %26 {strides = array<i32>} : memref<1x16x128xf32, #tpu.memory_space<vmem>>, vector<1x16x128xf32>,
    return
  }
  func.func @transform_0(%arg0: i32) -> (i32, i32, i32) {
    %c0_i32 = arith.constant 0 : i32
    %c0_i32_0 = arith.constant 0 : i32
    %c0_i32_1 = arith.constant 0 : i32
    return %arg0, %c0_i32, %c0_i32_0 : i32, i32, i32
  }
  func.func @transform_1(%arg0: i32) -> (i32, i32) {
    %c0_i32 = arith.constant 0 : i32
    %c0_i32_0 = arith.constant 0 : i32
    %c0_i32_1 = arith.constant 0 : i32
    return %c0_i32, %c0_i32_0 : i32, i32
  }
  func.func @transform_2(%arg0: i32) -> (i32, i32) {
    %c0_i32 = arith.constant 0 : i32
    %c0_i32_0 = arith.constant 0 : i32
    %c0_i32_1 = arith.constant 0 : i32
    return %c0_i32, %c0_i32_0 : i32, i32
  }
  func.func @transform_3(%arg0: i32) -> (i32, i32) {
    %c0_i32 = arith.constant 0 : i32
    %c0_i32_0 = arith.constant 0 : i32
    %c0_i32_1 = arith.constant 0 : i32
    return %c0_i32, %c0_i32_0 : i32, i32
  }
  func.func @transform_4(%arg0: i32) -> (i32, i32) {
    %c0_i32 = arith.constant 0 : i32
    %c0_i32_0 = arith.constant 0 : i32
    %c0_i32_1 = arith.constant 0 : i32
    return %c0_i32, %c0_i32_0 : i32, i32
  }
  func.func @transform_5(%arg0: i32) -> (i32, i32, i32) {
    %c0_i32 = arith.constant 0 : i32
    %c0_i32_0 = arith.constant 0 : i32
    %c0_i32_1 = arith.constant 0 : i32
    return %arg0, %c0_i32, %c0_i32_0 : i32, i32, i32
  }
}

</mosaic_0001>

<llo_original>
// kernel: tpu_custom_call.1
$region0: #{tpu_custom_call.1}
  #allocation0 [shape = 'u32[]', space=smem, size = 0x4, offset = 0x4, fixed_abs, tag = 'smem constant byte address 0x4 - core index']
  #allocation1 [shape = 'u32[144,128]{1,0:T(1,128)}', space=vmem, size = 0x12000, scoped, tag = 'internal scratch']
  %s0 = inlined_call_operand.vmem [shape: f32[2,18,128], index: 0, kind: input, shape index: {}]
  %s1 = inlined_call_operand.hbm [shape: f32[384,256], index: 1, kind: input, shape index: {}]
  %s2 = inlined_call_operand.vmem [shape: f32[1,256], index: 2, kind: input, shape index: {}]
  %s3 = inlined_call_operand.hbm [shape: f32[256,128], index: 3, kind: input, shape index: {}]
  %s4 = inlined_call_operand.vmem [shape: f32[1,128], index: 4, kind: input, shape index: {}]
  %s5 = inlined_call_operand.hbm [shape: f32[2,16,128], index: 5, kind: output, shape index: {}]
  %s6 = sld [smem:[#allocation0]]
  $region61: #{tpu_custom_call.1} parent=0
    _
  %s8 = ssub.s32 1, %s6
  %s9 = scalar_select 0, %s8, %s6
  $region1: #{tpu_custom_call.1} parent=0
    #allocation2 [shape = 'u8[393216]{0}', space=vmem, size = 0x60000, scoped, tag = 'input window, operand 1, single buffered']
    #allocation3 [shape = 's32[2]{0}', space=sflag, size = 0x8, scoped, tag = 'scoped memory for tpu_custom_call.1']
    #allocation4 [shape = 's32[2]{0}', space=sflag, size = 0x8, scoped, tag = 'scoped memory for tpu_custom_call.1']
    #allocation5 [shape = 'u8[131072]{0}', space=vmem, size = 0x20000, scoped, tag = 'input window, operand 3, single buffered']
    #allocation6 [shape = 's32[1]{0}', space=sflag, size = 0x4, scoped, tag = 'scoped memory for tpu_custom_call.1']
    #allocation7 [shape = 'u8[16384]{0}', space=vmem, size = 0x4000, scoped, tag = 'output window, operand 0']
    %10 = vsyncpa [#allocation3], 0
    %11 = vsyncpa [#allocation6], 0
    %12 = vsyncpa [#allocation4], 0
    %s13 = scalar_lea.sflag [#allocation4], 1
    %14 = vsyncpa %s13, 0
    loop: start=0, step=1, limit=4
    $region2: #{tpu_custom_call.1} parent=1 // loop_pre_header
      _
    $region3: #{tpu_custom_call.1} parent=1 // loop_header
      %s16 = sphi 0, %s20
      %p17 = scmp.ge.s32.totalorder %s16, 4
      %s26 = sphi 0, %s28
      %s29 = sphi 0, %s26
      %s30 = sphi 0, %s29
      %s46 = sphi 0, %s30
      %s50 = sphi 0, %s50
      %s52 = sphi 0, %s50
      %s53 = sphi 0, %s52
      %s67 = sphi 0, %s53
      %s71 = sphi 0, %s71
      %s73 = sphi 0, %s71
      %s74 = sphi 0, %s73
      %s88 = sphi 0, %s74
      %s92 = sphi 0, %s92
      %s94 = sphi 0, %s92
      %s95 = sphi 0, %s94
      %s109 = sphi 0, %s95
      %s113 = sphi 0, %s113
      %s115 = sphi 0, %s113
      %s116 = sphi 0, %s115
      %s130 = sphi 0, %s116
      %s136 = sphi 0, %s138
      %s139 = sphi 0, %s136
      %s140 = sphi 0, %s139
      %s156 = sphi 0, %s140
    $region4: #{tpu_custom_call.1} parent=1 // loop_header_branch
      %19 = sbr.rel (%p17) target = $region8
    $region5: #{tpu_custom_call.1} parent=1 // loop_body
      %s21 = ssub.s32 %s16, 1
      %s22 = ssub.s32 %s16, 2
      %s23 = sadd.s32 %s16, 1
      %s24 = ssub.s32 %s16, %s23
      %p25 = scmp.eq.s32.totalorder %s24, 0
      %s27 = sadd.s32 %s26, 1
      %s28 = scalar_select %p25, %s26, %s27
      %p31 = pneg %p25
      %p32 = scmp.eq.s32.totalorder %s16, 1
      %p33 = por %p31, %p32
      %p34 = scmp.ne.s32.totalorder %s26, %s29
      %p35 = scmp.eq.s32.totalorder %s16, 0
      %p36 = por %p34, %p35
      %p37 = scmp.ne.s32.totalorder %s26, %s29
      %p38 = scmp.eq.s32.totalorder %s21, 1
      %p39 = por %p37, %p38
      %p40 = scmp.ne.s32.totalorder %s29, %s30
      %p41 = scmp.eq.s32.totalorder %s21, 0
      %p42 = por %p40, %p41
      %p43 = scmp.ne.s32.totalorder %s29, %s30
      %p44 = scmp.eq.s32.totalorder %s22, 1
      %p45 = por %p43, %p44
      %p47 = scmp.ne.s32.totalorder %s30, %s46
      %p48 = scmp.eq.s32.totalorder %s22, 0
      %p49 = por %p47, %p48
      %s51 = sadd.s32 %s50, 1
      %p54 = scmp.eq.s32.totalorder %s16, 1
      %p55 = scmp.ne.s32.totalorder %s50, %s52
      %p56 = scmp.eq.s32.totalorder %s16, 0
      %p57 = por %p55, %p56
      %p58 = scmp.ne.s32.totalorder %s50, %s52
      %p59 = scmp.eq.s32.totalorder %s21, 1
      %p60 = por %p58, %p59
      %p61 = scmp.ne.s32.totalorder %s52, %s53
      %p62 = scmp.eq.s32.totalorder %s21, 0
      %p63 = por %p61, %p62
      %p64 = scmp.ne.s32.totalorder %s52, %s53
      %p65 = scmp.eq.s32.totalorder %s22, 1
      %p66 = por %p64, %p65
      %p68 = scmp.ne.s32.totalorder %s53, %s67
      %p69 = scmp.eq.s32.totalorder %s22, 0
      %p70 = por %p68, %p69
      %s72 = sadd.s32 %s71, 1
      %p75 = scmp.eq.s32.totalorder %s16, 1
      %p76 = scmp.ne.s32.totalorder %s71, %s73
      %p77 = scmp.eq.s32.totalorder %s16, 0
      %p78 = por %p76, %p77
      %p79 = scmp.ne.s32.totalorder %s71, %s73
      %p80 = scmp.eq.s32.totalorder %s21, 1
      %p81 = por %p79, %p80
      %p82 = scmp.ne.s32.totalorder %s73, %s74
      %p83 = scmp.eq.s32.totalorder %s21, 0
      %p84 = por %p82, %p83
      %p85 = scmp.ne.s32.totalorder %s73, %s74
      %p86 = scmp.eq.s32.totalorder %s22, 1
      %p87 = por %p85, %p86
      %p89 = scmp.ne.s32.totalorder %s74, %s88
      %p90 = scmp.eq.s32.totalorder %s22, 0
      %p91 = por %p89, %p90
      %s93 = sadd.s32 %s92, 1
      %p96 = scmp.eq.s32.totalorder %s16, 1
      %p97 = scmp.ne.s32.totalorder %s92, %s94
      %p98 = scmp.eq.s32.totalorder %s16, 0
      %p99 = por %p97, %p98
      %p100 = scmp.ne.s32.totalorder %s92, %s94
      %p101 = scmp.eq.s32.totalorder %s21, 1
      %p102 = por %p100, %p101
      %p103 = scmp.ne.s32.totalorder %s94, %s95
      %p104 = scmp.eq.s32.totalorder %s21, 0
      %p105 = por %p103, %p104
      %p106 = scmp.ne.s32.totalorder %s94, %s95
      %p107 = scmp.eq.s32.totalorder %s22, 1
      %p108 = por %p106, %p107
      %p110 = scmp.ne.s32.totalorder %s95, %s109
      %p111 = scmp.eq.s32.totalorder %s22, 0
      %p112 = por %p110, %p111
      %s114 = sadd.s32 %s113, 1
      %p117 = scmp.eq.s32.totalorder %s16, 1
      %p118 = scmp.ne.s32.totalorder %s113, %s115
      %p119 = scmp.eq.s32.totalorder %s16, 0
      %p120 = por %p118, %p119
      %p121 = scmp.ne.s32.totalorder %s113, %s115
      %p122 = scmp.eq.s32.totalorder %s21, 1
      %p123 = por %p121, %p122
      %p124 = scmp.ne.s32.totalorder %s115, %s116
      %p125 = scmp.eq.s32.totalorder %s21, 0
      %p126 = por %p124, %p125
      %p127 = scmp.ne.s32.totalorder %s115, %s116
      %p128 = scmp.eq.s32.totalorder %s22, 1
      %p129 = por %p127, %p128
      %p131 = scmp.ne.s32.totalorder %s116, %s130
      %p132 = scmp.eq.s32.totalorder %s22, 0
      %p133 = por %p131, %p132
      %s134 = ssub.s32 %s16, %s23
      %p135 = scmp.eq.s32.totalorder %s134, 0
      %s137 = sadd.s32 %s136, 1
      %s138 = scalar_select %p135, %s136, %s137
      %p141 = pneg %p135
      %p142 = scmp.eq.s32.totalorder %s16, 1
      %p143 = por %p141, %p142
      %p144 = scmp.ne.s32.totalorder %s136, %s139
      %p145 = scmp.eq.s32.totalorder %s16, 0
      %p146 = por %p144, %p145
      %p147 = scmp.ne.s32.totalorder %s136, %s139
      %p148 = scmp.eq.s32.totalorder %s21, 1
      %p149 = por %p147, %p148
      %p150 = scmp.ne.s32.totalorder %s139, %s140
      %p151 = scmp.eq.s32.totalorder %s21, 0
      %p152 = por %p150, %p151
      %p153 = scmp.ne.s32.totalorder %s139, %s140
      %p154 = scmp.eq.s32.totalorder %s22, 1
      %p155 = por %p153, %p154
      %p157 = scmp.ne.s32.totalorder %s140, %s156
      %p158 = scmp.eq.s32.totalorder %s22, 0
      %p159 = por %p157, %p158
      %p160 = scmp.le.s32.totalorder 1, %s16
      %p161 = scmp.lt.s32.totalorder %s16, 3
      %p162 = pnand %p160, %p161
      %p163 = pneg %p162
      // Predicated region
      $region9: #{tpu_custom_call.1} parent=5 // pred_check
        _
      $region10: #{tpu_custom_call.1} parent=5 // pred_check_branch
        %165 = sbr.rel (%p162) target = $region12
      $region11: #{tpu_custom_call.1} parent=5 // pred_region
        %s166 = ssub.s32 %s16, 1
        // Predicated region
        $region13: #{tpu_custom_call.1} parent=11 // pred_check
          %p167 = pneg %p63
        $region14: #{tpu_custom_call.1} parent=11 // pred_check_branch
          %169 = sbr.rel (%p167) target = $region16
        $region15: #{tpu_custom_call.1} parent=11 // pred_region
          %s171 = ssub.s32 12288, 12288
          %172 = vsyncadd [#allocation3], %s171
          %s173 = sshll.u32 [#allocation2], 4
          %s174 = int_to_ptr.vmem [resolvable:$true] %s173
          %179 = dma.hbm_to_vmem [thread:$0]  %s1, 12288, %s174, [#allocation3], 256, 256, 16
        $region16: #{tpu_custom_call.1} parent=11 // pred_fallthru
          _
        // Predicated region
        $region17: #{tpu_custom_call.1} parent=11 // pred_check
          %p180 = pneg %p84
        $region18: #{tpu_custom_call.1} parent=11 // pred_check_branch
          %182 = sbr.rel (%p180) target = $region20
        $region19: #{tpu_custom_call.1} parent=11 // pred_region
          _
        $region20: #{tpu_custom_call.1} parent=11 // pred_fallthru
          _
        // Predicated region
        $region21: #{tpu_custom_call.1} parent=11 // pred_check
          %p183 = pneg %p105
        $region22: #{tpu_custom_call.1} parent=11 // pred_check_branch
          %185 = sbr.rel (%p183) target = $region24
        $region23: #{tpu_custom_call.1} parent=11 // pred_region
          %s187 = ssub.s32 4096, 4096
          %188 = vsyncadd [#allocation6], %s187
          %s189 = sshll.u32 [#allocation5], 4
          %s190 = int_to_ptr.vmem [resolvable:$true] %s189
          %195 = dma.hbm_to_vmem [thread:$0]  %s3, 4096, %s190, [#allocation6], 128, 128, 8
        $region24: #{tpu_custom_call.1} parent=11 // pred_fallthru
          _
        // Predicated region
        $region25: #{tpu_custom_call.1} parent=11 // pred_check
          %p196 = pneg %p126
        $region26: #{tpu_custom_call.1} parent=11 // pred_check_branch
          %198 = sbr.rel (%p196) target = $region28
        $region27: #{tpu_custom_call.1} parent=11 // pred_region
          _
        $region28: #{tpu_custom_call.1} parent=11 // pred_fallthru
          _
      $region12: #{tpu_custom_call.1} parent=5 // pred_fallthru
        _
      %p199 = scmp.lt.s32.totalorder %s16, 2
      // Predicated region
      $region29: #{tpu_custom_call.1} parent=5 // pred_check
        %p200 = pneg %p199
      $region30: #{tpu_custom_call.1} parent=5 // pred_check_branch
        %202 = sbr.rel (%p200) target = $region32
      $region31: #{tpu_custom_call.1} parent=5 // pred_region
        // Predicated region
        $region33: #{tpu_custom_call.1} parent=31 // pred_check
          %p203 = pneg %p36
        $region34: #{tpu_custom_call.1} parent=31 // pred_check_branch
          %205 = sbr.rel (%p203) target = $region36
        $region35: #{tpu_custom_call.1} parent=31 // pred_region
          %p206 = scmp.lt.s32.totalorder %s16, 1
          %s207 = scalar_select %p206, %s16, 1
          %s208 = smul.addr %s207, 3
          %s209 = smul.addr %s208, 8
          %s210 = scalar_lea.vmem %s0, %s209
        $region36: #{tpu_custom_call.1} parent=31 // pred_fallthru
          _
      $region32: #{tpu_custom_call.1} parent=5 // pred_fallthru
        _
      %p211 = scmp.le.s32.totalorder 1, %s16
      %p212 = scmp.lt.s32.totalorder %s16, 3
      %p213 = pnand %p211, %p212
      %p214 = pneg %p213
      // Predicated region
      $region37: #{tpu_custom_call.1} parent=5 // pred_check
        _
      $region38: #{tpu_custom_call.1} parent=5 // pred_check_branch
        %216 = sbr.rel (%p213) target = $region40
      $region39: #{tpu_custom_call.1} parent=5 // pred_region
        %s217 = ssub.s32 %s16, 1
        // Predicated region
        $region41: #{tpu_custom_call.1} parent=39 // pred_check
          %p218 = pneg %p63
        $region42: #{tpu_custom_call.1} parent=39 // pred_check_branch
          %220 = sbr.rel (%p218) target = $region44
        $region43: #{tpu_custom_call.1} parent=39 // pred_region
          %221 = dma.done [#allocation3], 12288
        $region44: #{tpu_custom_call.1} parent=39 // pred_fallthru
          _
        // Predicated region
        $region45: #{tpu_custom_call.1} parent=39 // pred_check
          %p222 = pneg %p105
        $region46: #{tpu_custom_call.1} parent=39 // pred_check_branch
          %224 = sbr.rel (%p222) target = $region48
        $region47: #{tpu_custom_call.1} parent=39 // pred_region
          %225 = dma.done [#allocation6], 4096
        $region48: #{tpu_custom_call.1} parent=39 // pred_fallthru
          _
        %p226 = scmp.lt.s32.totalorder %s21, 1
        %s227 = scalar_select %p226, %s21, 1
        %s228 = smul.addr %s227, 3
        %s229 = smul.addr %s228, 8
        %s230 = scalar_lea.vmem %s0, %s229
        %p231 = pneg %p42
        %p232 = pneg %p39
        %p233 = pneg %p63
        %p234 = pneg %p60
        %p235 = pneg %p84
        %p236 = pneg %p81
        %p237 = pneg %p105
        %p238 = pneg %p102
        %p239 = pneg %p126
        %p240 = pneg %p123
        %p241 = pneg %p152
        %p242 = pneg %p149
        %s243 = sand.u32 %s139, 1
        %s244 = scalar_lea.sflag [#allocation4], %s243
        %s245 = sand.u32 %s139, 1
        %s246 = smul.addr %s245, 16
        %s247 = scalar_lea.vmem [#allocation7], %s246
        %p248 = scmp.lt.s32.totalorder %s21, 1
        %s249 = scalar_select %p248, %s21, 1
        %s250 = smul.addr %s249, 3
        %s251 = smul.addr %s250, 8
        %s252 = scalar_lea.vmem %s0, %s251
        %v253 = vld [vmem:[%s252] sm:$0xff]
        %v254 = vld [vmem:[%s252 + $0x8] sm:$0xff]
        %v255 = vld [vmem:[%s252 + $0x1] sm:$0xff]
        %v256 = vld [vmem:[%s252 + $0x9] sm:$0xff]
        %v257 = vld [vmem:[%s252 + $0x2] sm:$0xff]
        %v258 = vld [vmem:[%s252 + $0xa] sm:$0xff]
        %v259 = vld [vmem:[#allocation2] sm:$0xff]
        %v260 = vld [vmem:[#allocation2 + $0x8] sm:$0xff]
        %v261 = vld [vmem:[#allocation2 + $0x10] sm:$0xff]
        %v262 = vld [vmem:[#allocation2 + $0x18] sm:$0xff]
        %v263 = vld [vmem:[#allocation2 + $0x20] sm:$0xff]
        %v264 = vld [vmem:[#allocation2 + $0x28] sm:$0xff]
        %v265 = vld [vmem:[#allocation2 + $0x30] sm:$0xff]
        %v266 = vld [vmem:[#allocation2 + $0x38] sm:$0xff]
        %v267 = vld [vmem:[#allocation2 + $0x40] sm:$0xff]
        %v268 = vld [vmem:[#allocation2 + $0x48] sm:$0xff]
        %v269 = vld [vmem:[#allocation2 + $0x50] sm:$0xff]
        %v270 = vld [vmem:[#allocation2 + $0x58] sm:$0xff]
        %v271 = vld [vmem:[#allocation2 + $0x60] sm:$0xff]
        %v272 = vld [vmem:[#allocation2 + $0x68] sm:$0xff]
        %v273 = vld [vmem:[#allocation2 + $0x70] sm:$0xff]
        %v274 = vld [vmem:[#allocation2 + $0x78] sm:$0xff]
        %v275 = vld [vmem:[#allocation2 + $0x80] sm:$0xff]
        %v276 = vld [vmem:[#allocation2 + $0x88] sm:$0xff]
        %v277 = vld [vmem:[#allocation2 + $0x90] sm:$0xff]
        %v278 = vld [vmem:[#allocation2 + $0x98] sm:$0xff]
        %v279 = vld [vmem:[#allocation2 + $0xa0] sm:$0xff]
        %v280 = vld [vmem:[#allocation2 + $0xa8] sm:$0xff]
        %v281 = vld [vmem:[#allocation2 + $0xb0] sm:$0xff]
        %v282 = vld [vmem:[#allocation2 + $0xb8] sm:$0xff]
        %v283 = vld [vmem:[#allocation2 + $0xc0] sm:$0xff]
        %v284 = vld [vmem:[#allocation2 + $0xc8] sm:$0xff]
        %v285 = vld [vmem:[#allocation2 + $0xd0] sm:$0xff]
        %v286 = vld [vmem:[#allocation2 + $0xd8] sm:$0xff]
        %v287 = vld [vmem:[#allocation2 + $0xe0] sm:$0xff]
        %v288 = vld [vmem:[#allocation2 + $0xe8] sm:$0xff]
        %v289 = vld [vmem:[#allocation2 + $0xf0] sm:$0xff]
        %v290 = vld [vmem:[#allocation2 + $0xf8] sm:$0xff]
        %v291 = vld [vmem:[#allocation2 + $0x100] sm:$0xff]
        %v292 = vld [vmem:[#allocation2 + $0x108] sm:$0xff]
        %v293 = vld [vmem:[#allocation2 + $0x110] sm:$0xff]
        %v294 = vld [vmem:[#allocation2 + $0x118] sm:$0xff]
        %v295 = vld [vmem:[#allocation2 + $0x120] sm:$0xff]
        %v296 = vld [vmem:[#allocation2 + $0x128] sm:$0xff]
        %v297 = vld [vmem:[#allocation2 + $0x130] sm:$0xff]
        %v298 = vld [vmem:[#allocation2 + $0x138] sm:$0xff]
        %v299 = vld [vmem:[#allocation2 + $0x140] sm:$0xff]
        %v300 = vld [vmem:[#allocation2 + $0x148] sm:$0xff]
        %v301 = vld [vmem:[#allocation2 + $0x150] sm:$0xff]
        %v302 = vld [vmem:[#allocation2 + $0x158] sm:$0xff]
        %v303 = vld [vmem:[#allocation2 + $0x160] sm:$0xff]
        %v304 = vld [vmem:[#allocation2 + $0x168] sm:$0xff]
        %v305 = vld [vmem:[#allocation2 + $0x170] sm:$0xff]
        %v306 = vld [vmem:[#allocation2 + $0x178] sm:$0xff]
        %v307 = vld [vmem:[#allocation2 + $0x180] sm:$0xff]
        %v308 = vld [vmem:[#allocation2 + $0x188] sm:$0xff]
        %v309 = vld [vmem:[#allocation2 + $0x190] sm:$0xff]
        %v310 = vld [vmem:[#allocation2 + $0x198] sm:$0xff]
        %v311 = vld [vmem:[#allocation2 + $0x1a0] sm:$0xff]
        %v312 = vld [vmem:[#allocation2 + $0x1a8] sm:$0xff]
        %v313 = vld [vmem:[#allocation2 + $0x1b0] sm:$0xff]
        %v314 = vld [vmem:[#allocation2 + $0x1b8] sm:$0xff]
        %v315 = vld [vmem:[#allocation2 + $0x1c0] sm:$0xff]
        %v316 = vld [vmem:[#allocation2 + $0x1c8] sm:$0xff]
        %v317 = vld [vmem:[#allocation2 + $0x1d0] sm:$0xff]
        %v318 = vld [vmem:[#allocation2 + $0x1d8] sm:$0xff]
        %v319 = vld [vmem:[#allocation2 + $0x1e0] sm:$0xff]
        %v320 = vld [vmem:[#allocation2 + $0x1e8] sm:$0xff]
        %v321 = vld [vmem:[#allocation2 + $0x1f0] sm:$0xff]
        %v322 = vld [vmem:[#allocation2 + $0x1f8] sm:$0xff]
        %v323 = vld [vmem:[#allocation2 + $0x200] sm:$0xff]
        %v324 = vld [vmem:[#allocation2 + $0x208] sm:$0xff]
        %v325 = vld [vmem:[#allocation2 + $0x210] sm:$0xff]
        %v326 = vld [vmem:[#allocation2 + $0x218] sm:$0xff]
        %v327 = vld [vmem:[#allocation2 + $0x220] sm:$0xff]
        %v328 = vld [vmem:[#allocation2 + $0x228] sm:$0xff]
        %v329 = vld [vmem:[#allocation2 + $0x230] sm:$0xff]
        %v330 = vld [vmem:[#allocation2 + $0x238] sm:$0xff]
        %v331 = vld [vmem:[#allocation2 + $0x240] sm:$0xff]
        %v332 = vld [vmem:[#allocation2 + $0x248] sm:$0xff]
        %v333 = vld [vmem:[#allocation2 + $0x250] sm:$0xff]
        %v334 = vld [vmem:[#allocation2 + $0x258] sm:$0xff]
        %v335 = vld [vmem:[#allocation2 + $0x260] sm:$0xff]
        %v336 = vld [vmem:[#allocation2 + $0x268] sm:$0xff]
        %v337 = vld [vmem:[#allocation2 + $0x270] sm:$0xff]
        %v338 = vld [vmem:[#allocation2 + $0x278] sm:$0xff]
        %v339 = vld [vmem:[#allocation2 + $0x280] sm:$0xff]
        %v340 = vld [vmem:[#allocation2 + $0x288] sm:$0xff]
        %v341 = vld [vmem:[#allocation2 + $0x290] sm:$0xff]
        %v342 = vld [vmem:[#allocation2 + $0x298] sm:$0xff]
        %v343 = vld [vmem:[#allocation2 + $0x2a0] sm:$0xff]
        %v344 = vld [vmem:[#allocation2 + $0x2a8] sm:$0xff]
        %v345 = vld [vmem:[#allocation2 + $0x2b0] sm:$0xff]
        %v346 = vld [vmem:[#allocation2 + $0x2b8] sm:$0xff]
        %v347 = vld [vmem:[#allocation2 + $0x2c0] sm:$0xff]
        %v348 = vld [vmem:[#allocation2 + $0x2c8] sm:$0xff]
        %v349 = vld [vmem:[#allocation2 + $0x2d0] sm:$0xff]
        %v350 = vld [vmem:[#allocation2 + $0x2d8] sm:$0xff]
        %v351 = vld [vmem:[#allocation2 + $0x2e0] sm:$0xff]
        %v352 = vld [vmem:[#allocation2 + $0x2e8] sm:$0xff]
        %v353 = vld [vmem:[#allocation2 + $0x2f0] sm:$0xff]
        %v354 = vld [vmem:[#allocation2 + $0x2f8] sm:$0xff]
        %v355 = vld [vmem:[%s2] sm:$0x3]
        %v357 = vlaneseq
        %v358 = vshrl.u32 %v357, 7
        %v359 = vsub.s32 0, %v358
        %v360 = vrot.slane %v355, %v359
        %v361 = vlaneseq
        %v362 = vshrl.u32 %v361, 7
        %v363 = vsub.s32 1, %v362
        %v364 = vrot.slane %v355, %v363
        %367 = vmatprep.subr.mxu0 %v290
        %368 = vmatpush1.msra.mxu0 %v289
        %369 = vmatprep.subr.mxu0 %v288
        %370 = vmatpush1.msra.mxu0 %v287
        %371 = vmatprep.subr.mxu0 %v286
        %372 = vmatpush1.msra.mxu0 %v285
        %373 = vmatprep.subr.mxu0 %v284
        %374 = vmatpush1.msra.mxu0 %v283
        %375 = vmatprep.subr.mxu0 %v282
        %376 = vmatpush1.msra.mxu0 %v281
        %377 = vmatprep.subr.mxu0 %v280
        %378 = vmatpush1.msra.mxu0 %v279
        %379 = vmatprep.subr.mxu0 %v278
        %380 = vmatpush1.msra.mxu0 %v277
        %381 = vmatprep.subr.mxu0 %v276
        %382 = vmatpush1.msra.mxu0 %v275
        %383 = vmatprep.subr.mxu0 %v274
        %384 = vmatpush1.msra.mxu0 %v273
        %385 = vmatprep.subr.mxu0 %v272
        %386 = vmatpush1.msra.mxu0 %v271
        %387 = vmatprep.subr.mxu0 %v270
        %388 = vmatpush1.msra.mxu0 %v269
        %389 = vmatprep.subr.mxu0 %v268
        %390 = vmatpush1.msra.mxu0 %v267
        %391 = vmatprep.subr.mxu0 %v266
        %392 = vmatpush1.msra.mxu0 %v265
        %393 = vmatprep.subr.mxu0 %v264
        %394 = vmatpush1.msra.mxu0 %v263
        %395 = vmatprep.subr.mxu0 %v262
        %396 = vmatpush1.msra.mxu0 %v261
        %397 = vmatprep.subr.mxu0 %v260
        %398 = vmatpush1.msra.mxu0 %v259
        %399 = vmatprep.subr.mxu0 %v322
        %400 = vmatpush2.msra.mxu0 %v321
        %401 = vmatprep.subr.mxu0 %v320
        %402 = vmatpush2.msra.mxu0 %v319
        %403 = vmatprep.subr.mxu0 %v318
        %404 = vmatpush2.msra.mxu0 %v317
        %405 = vmatprep.subr.mxu0 %v316
        %406 = vmatpush2.msra.mxu0 %v315
        %407 = vmatprep.subr.mxu0 %v314
        %408 = vmatpush2.msra.mxu0 %v313
        %409 = vmatprep.subr.mxu0 %v312
        %410 = vmatpush2.msra.mxu0 %v311
        %411 = vmatprep.subr.mxu0 %v310
        %412 = vmatpush2.msra.mxu0 %v309
        %413 = vmatprep.subr.mxu0 %v308
        %414 = vmatpush2.msra.mxu0 %v307
        %415 = vmatprep.subr.mxu0 %v306
        %416 = vmatpush2.msra.mxu0 %v305
        %417 = vmatprep.subr.mxu0 %v304
        %418 = vmatpush2.msra.mxu0 %v303
        %419 = vmatprep.subr.mxu0 %v302
        %420 = vmatpush2.msra.mxu0 %v301
        %421 = vmatprep.subr.mxu0 %v300
        %422 = vmatpush2.msra.mxu0 %v299
        %423 = vmatprep.subr.mxu0 %v298
        %424 = vmatpush2.msra.mxu0 %v297
        %425 = vmatprep.subr.mxu0 %v296
        %426 = vmatpush2.msra.mxu0 %v295
        %427 = vmatprep.subr.mxu0 %v294
        %428 = vmatpush2.msra.mxu0 %v293
        %429 = vmatprep.subr.mxu0 %v292
        %430 = vmatpush2.msra.mxu0 %v291
        %431 = vmatprep.mubr.f32.mxu0 %v255
        %432 = vmatmul.mubr.f32.gmra.mxu0 %v253
        %v433 = vpop.f32.mrf.mxu0
        %v434 = vadd.f32 %v360, %v433
        %v435 = vpop.f32.mrf.mxu0
        %v436 = vadd.f32 %v364, %v435
        %437 = vmatprep.mubr.f32.mxu0 %v256
        %438 = vmatmul.mubr.f32.gmra.mxu0 %v254
        %v439 = vpop.f32.mrf.mxu0
        %v440 = vadd.f32 %v360, %v439
        %v441 = vpop.f32.mrf.mxu0
        %v442 = vadd.f32 %v364, %v441
        %443 = vdwg.mxu0
        %444 = vmatprep.subr.mxu0 %v354
        %445 = vmatpush1.msra.mxu0 %v353
        %446 = vmatprep.subr.mxu0 %v352
        %447 = vmatpush1.msra.mxu0 %v351
        %448 = vmatprep.subr.mxu0 %v350
        %449 = vmatpush1.msra.mxu0 %v349
        %450 = vmatprep.subr.mxu0 %v348
        %451 = vmatpush1.msra.mxu0 %v347
        %452 = vmatprep.subr.mxu0 %v346
        %453 = vmatpush1.msra.mxu0 %v345
        %454 = vmatprep.subr.mxu0 %v344
        %455 = vmatpush1.msra.mxu0 %v343
        %456 = vmatprep.subr.mxu0 %v342
        %457 = vmatpush1.msra.mxu0 %v341
        %458 = vmatprep.subr.mxu0 %v340
        %459 = vmatpush1.msra.mxu0 %v339
        %460 = vmatprep.subr.mxu0 %v338
        %461 = vmatpush1.msra.mxu0 %v337
        %462 = vmatprep.subr.mxu0 %v336
        %463 = vmatpush1.msra.mxu0 %v335
        %464 = vmatprep.subr.mxu0 %v334
        %465 = vmatpush1.msra.mxu0 %v333
        %466 = vmatprep.subr.mxu0 %v332
        %467 = vmatpush1.msra.mxu0 %v331
        %468 = vmatprep.subr.mxu0 %v330
        %469 = vmatpush1.msra.mxu0 %v329
        %470 = vmatprep.subr.mxu0 %v328
        %471 = vmatpush1.msra.mxu0 %v327
        %472 = vmatprep.subr.mxu0 %v326
        %473 = vmatpush1.msra.mxu0 %v325
        %474 = vmatprep.subr.mxu0 %v324
        %475 = vmatpush1.msra.mxu0 %v323
        %476 = vmatprep.subr.mxu0 0.0
        %477 = vmatpush2.msra.mxu0 0.0
        %478 = vmatprep.subr.mxu0 0.0
        %479 = vmatpush2.msra.mxu0 0.0
        %480 = vmatprep.subr.mxu0 0.0
        %481 = vmatpush2.msra.mxu0 0.0
        %482 = vmatprep.subr.mxu0 0.0
        %483 = vmatpush2.msra.mxu0 0.0
        %484 = vmatprep.subr.mxu0 0.0
        %485 = vmatpush2.msra.mxu0 0.0
        %486 = vmatprep.subr.mxu0 0.0
        %487 = vmatpush2.msra.mxu0 0.0
        %488 = vmatprep.subr.mxu0 0.0
        %489 = vmatpush2.msra.mxu0 0.0
        %490 = vmatprep.subr.mxu0 0.0
        %491 = vmatpush2.msra.mxu0 0.0
        %492 = vmatprep.subr.mxu0 0.0
        %493 = vmatpush2.msra.mxu0 0.0
        %494 = vmatprep.subr.mxu0 0.0
        %495 = vmatpush2.msra.mxu0 0.0
        %496 = vmatprep.subr.mxu0 0.0
        %497 = vmatpush2.msra.mxu0 0.0
        %498 = vmatprep.subr.mxu0 0.0
        %499 = vmatpush2.msra.mxu0 0.0
        %500 = vmatprep.subr.mxu0 0.0
        %501 = vmatpush2.msra.mxu0 0.0
        %502 = vmatprep.subr.mxu0 0.0
        %503 = vmatpush2.msra.mxu0 0.0
        %504 = vmatprep.subr.mxu0 0.0
        %505 = vmatpush2.msra.mxu0 0.0
        %506 = vmatprep.subr.mxu0 0.0
        %507 = vmatpush2.msra.mxu0 0.0
        %508 = vmatprep.mubr.f32.mxu0 0.0
        %509 = vmatmul.mubr.f32.gmra.mxu0 %v257
        %v510 = vpop.f32.mrf.mxu0
        %v511 = vadd.f32 %v434, %v510
        %v512 = vpop.f32.mrf.mxu0
        %v513 = vadd.f32 %v436, %v512
        %514 = vmatprep.mubr.f32.mxu0 0.0
        %515 = vmatmul.mubr.f32.gmra.mxu0 %v258
        %v516 = vpop.f32.mrf.mxu0
        %v517 = vadd.f32 %v440, %v516
        %v518 = vpop.f32.mrf.mxu0
        %v519 = vadd.f32 %v442, %v518
        %520 = vdwg.mxu0
        %v521 = vxor.u32 %v511, 2147483648
        %v522 = vxor.u32 %v513, 2147483648
        %v523 = vxor.u32 %v517, 2147483648
        %v524 = vxor.u32 %v519, 2147483648
        %v525 = vmul.f32 %v521, 1.442695
        %v526 = vpow.pop %v525
        %v527 = vmul.f32 %v522, 1.442695
        %v528 = vpow.pop %v527
        %v529 = vmul.f32 %v523, 1.442695
        %v530 = vpow.pop %v529
        %v531 = vmul.f32 %v524, 1.442695
        %v532 = vpow.pop %v531
        %v533 = vadd.f32 %v526, 1.0
        %v534 = vadd.f32 %v528, 1.0
        %v535 = vadd.f32 %v530, 1.0
        %v536 = vadd.f32 %v532, 1.0
        %v537 = vrcp.pop %v533
        %v538 = vmul.f32 1.0, %v537
        %v539 = vrcp.pop %v534
        %v540 = vmul.f32 1.0, %v539
        %v541 = vrcp.pop %v535
        %v542 = vmul.f32 1.0, %v541
        %v543 = vrcp.pop %v536
        %v544 = vmul.f32 1.0, %v543
        %v545 = vmul.f32 %v511, %v538
        %v546 = vmul.f32 %v513, %v540
        %v547 = vmul.f32 %v517, %v542
        %v548 = vmul.f32 %v519, %v544
        %v549 = vld [vmem:[#allocation5] sm:$0xff]
        %v550 = vld [vmem:[#allocation5 + $0x8] sm:$0xff]
        %v551 = vld [vmem:[#allocation5 + $0x10] sm:$0xff]
        %v552 = vld [vmem:[#allocation5 + $0x18] sm:$0xff]
        %v553 = vld [vmem:[#allocation5 + $0x20] sm:$0xff]
        %v554 = vld [vmem:[#allocation5 + $0x28] sm:$0xff]
        %v555 = vld [vmem:[#allocation5 + $0x30] sm:$0xff]
        %v556 = vld [vmem:[#allocation5 + $0x38] sm:$0xff]
        %v557 = vld [vmem:[#allocation5 + $0x40] sm:$0xff]
        %v558 = vld [vmem:[#allocation5 + $0x48] sm:$0xff]
        %v559 = vld [vmem:[#allocation5 + $0x50] sm:$0xff]
        %v560 = vld [vmem:[#allocation5 + $0x58] sm:$0xff]
        %v561 = vld [vmem:[#allocation5 + $0x60] sm:$0xff]
        %v562 = vld [vmem:[#allocation5 + $0x68] sm:$0xff]
        %v563 = vld [vmem:[#allocation5 + $0x70] sm:$0xff]
        %v564 = vld [vmem:[#allocation5 + $0x78] sm:$0xff]
        %v565 = vld [vmem:[#allocation5 + $0x80] sm:$0xff]
        %v566 = vld [vmem:[#allocation5 + $0x88] sm:$0xff]
        %v567 = vld [vmem:[#allocation5 + $0x90] sm:$0xff]
        %v568 = vld [vmem:[#allocation5 + $0x98] sm:$0xff]
        %v569 = vld [vmem:[#allocation5 + $0xa0] sm:$0xff]
        %v570 = vld [vmem:[#allocation5 + $0xa8] sm:$0xff]
        %v571 = vld [vmem:[#allocation5 + $0xb0] sm:$0xff]
        %v572 = vld [vmem:[#allocation5 + $0xb8] sm:$0xff]
        %v573 = vld [vmem:[#allocation5 + $0xc0] sm:$0xff]
        %v574 = vld [vmem:[#allocation5 + $0xc8] sm:$0xff]
        %v575 = vld [vmem:[#allocation5 + $0xd0] sm:$0xff]
        %v576 = vld [vmem:[#allocation5 + $0xd8] sm:$0xff]
        %v577 = vld [vmem:[#allocation5 + $0xe0] sm:$0xff]
        %v578 = vld [vmem:[#allocation5 + $0xe8] sm:$0xff]
        %v579 = vld [vmem:[#allocation5 + $0xf0] sm:$0xff]
        %v580 = vld [vmem:[#allocation5 + $0xf8] sm:$0xff]
        %v581 = vld [vmem:[%s4] sm:$0x1]
        %v583 = vlaneseq
        %v584 = vshrl.u32 %v583, 7
        %v585 = vsub.s32 0, %v584
        %v586 = vrot.slane %v581, %v585
        %588 = vmatprep.subr.mxu0 0.0
        %589 = vmatpush1.msra.mxu0 %v564
        %590 = vmatprep.subr.mxu0 0.0
        %591 = vmatpush1.msra.mxu0 %v563
        %592 = vmatprep.subr.mxu0 0.0
        %593 = vmatpush1.msra.mxu0 %v562
        %594 = vmatprep.subr.mxu0 0.0
        %595 = vmatpush1.msra.mxu0 %v561
        %596 = vmatprep.subr.mxu0 0.0
        %597 = vmatpush1.msra.mxu0 %v560
        %598 = vmatprep.subr.mxu0 0.0
        %599 = vmatpush1.msra.mxu0 %v559
        %600 = vmatprep.subr.mxu0 0.0
        %601 = vmatpush1.msra.mxu0 %v558
        %602 = vmatprep.subr.mxu0 0.0
        %603 = vmatpush1.msra.mxu0 %v557
        %604 = vmatprep.subr.mxu0 0.0
        %605 = vmatpush1.msra.mxu0 %v556
        %606 = vmatprep.subr.mxu0 0.0
        %607 = vmatpush1.msra.mxu0 %v555
        %608 = vmatprep.subr.mxu0 0.0
        %609 = vmatpush1.msra.mxu0 %v554
        %610 = vmatprep.subr.mxu0 0.0
        %611 = vmatpush1.msra.mxu0 %v553
        %612 = vmatprep.subr.mxu0 0.0
        %613 = vmatpush1.msra.mxu0 %v552
        %614 = vmatprep.subr.mxu0 0.0
        %615 = vmatpush1.msra.mxu0 %v551
        %616 = vmatprep.subr.mxu0 0.0
        %617 = vmatpush1.msra.mxu0 %v550
        %618 = vmatprep.subr.mxu0 0.0
        %619 = vmatpush1.msra.mxu0 %v549
        %620 = vmatprep.subr.mxu0 0.0
        %621 = vmatpush2.msra.mxu0 %v580
        %622 = vmatprep.subr.mxu0 0.0
        %623 = vmatpush2.msra.mxu0 %v579
        %624 = vmatprep.subr.mxu0 0.0
        %625 = vmatpush2.msra.mxu0 %v578
        %626 = vmatprep.subr.mxu0 0.0
        %627 = vmatpush2.msra.mxu0 %v577
        %628 = vmatprep.subr.mxu0 0.0
        %629 = vmatpush2.msra.mxu0 %v576
        %630 = vmatprep.subr.mxu0 0.0
        %631 = vmatpush2.msra.mxu0 %v575
        %632 = vmatprep.subr.mxu0 0.0
        %633 = vmatpush2.msra.mxu0 %v574
        %634 = vmatprep.subr.mxu0 0.0
        %635 = vmatpush2.msra.mxu0 %v573
        %636 = vmatprep.subr.mxu0 0.0
        %637 = vmatpush2.msra.mxu0 %v572
        %638 = vmatprep.subr.mxu0 0.0
        %639 = vmatpush2.msra.mxu0 %v571
        %640 = vmatprep.subr.mxu0 0.0
        %641 = vmatpush2.msra.mxu0 %v570
        %642 = vmatprep.subr.mxu0 0.0
        %643 = vmatpush2.msra.mxu0 %v569
        %644 = vmatprep.subr.mxu0 0.0
        %645 = vmatpush2.msra.mxu0 %v568
        %646 = vmatprep.subr.mxu0 0.0
        %647 = vmatpush2.msra.mxu0 %v567
        %648 = vmatprep.subr.mxu0 0.0
        %649 = vmatpush2.msra.mxu0 %v566
        %650 = vmatprep.subr.mxu0 0.0
        %651 = vmatpush2.msra.mxu0 %v565
        %652 = vmatprep.mubr.f32.mxu0 %v546
        %653 = vmatmul.mubr.f32.gmra.mxu0 %v545
        %v654 = vpop.f32.mrf.mxu0
        %v655 = vadd.f32 %v586, %v654
        %v656 = vpop.f32.mrf.mxu0
        %657 = vmatprep.mubr.f32.mxu0 %v548
        %658 = vmatmul.mubr.f32.gmra.mxu0 %v547
        %v659 = vpop.f32.mrf.mxu0
        %v660 = vadd.f32 %v586, %v659
        %v661 = vpop.f32.mrf.mxu0
        %662 = vdwg.mxu0
        %v663 = vadd.f32 %v655, %v255
        %v664 = vadd.f32 %v660, %v256
        %665 = vst [vmem:[%s247] sm:$0xff] %v663
        %666 = vst [vmem:[%s247 + $0x8] sm:$0xff] %v664
        %s667 = sand.u32 %s139, 1
        %s668 = scalar_lea.sflag [#allocation4], %s667
        %s669 = sand.u32 %s139, 1
        %s670 = smul.addr %s669, 16
        %s671 = scalar_lea.vmem [#allocation7], %s670
        // Predicated region
        $region49: #{tpu_custom_call.1} parent=39 // pred_check
          %p672 = pneg %p149
        $region50: #{tpu_custom_call.1} parent=39 // pred_check_branch
          %674 = sbr.rel (%p672) target = $region52
        $region51: #{tpu_custom_call.1} parent=39 // pred_region
          %s676 = ssub.s32 256, 256
          %677 = vsyncadd %s668, %s676
          %s678 = smul.addr %s21, 2
          %s679 = smul.addr %s678, 128
          %s680 = scalar_lea.hbm %s5, %s679
          %s681 = sshll.u32 %s671, 4
          %s682 = int_to_ptr.vmem [resolvable:$true] %s681
          %687 = dma.vmem_to_hbm [thread:$0]  %s682, 256, %s680, %s668, 128, 128, 8
        $region52: #{tpu_custom_call.1} parent=39 // pred_fallthru
          _
      $region40: #{tpu_custom_call.1} parent=5 // pred_fallthru
        _
      %p688 = scmp.le.s32.totalorder 2, %s16
      // Predicated region
      $region53: #{tpu_custom_call.1} parent=5 // pred_check
        %p689 = pneg %p688
      $region54: #{tpu_custom_call.1} parent=5 // pred_check_branch
        %691 = sbr.rel (%p689) target = $region56
      $region55: #{tpu_custom_call.1} parent=5 // pred_region
        %s692 = ssub.s32 %s16, 2
        // Predicated region
        $region57: #{tpu_custom_call.1} parent=55 // pred_check
          %p693 = pneg %p155
        $region58: #{tpu_custom_call.1} parent=55 // pred_check_branch
          %695 = sbr.rel (%p693) target = $region60
        $region59: #{tpu_custom_call.1} parent=55 // pred_region
          %s696 = sand.u32 %s140, 1
          %s697 = scalar_lea.sflag [#allocation4], %s696
          %s698 = sand.u32 %s140, 1
          %s699 = smul.addr %s698, 16
          %s700 = scalar_lea.vmem [#allocation7], %s699
          %701 = dma.done %s697, 256
        $region60: #{tpu_custom_call.1} parent=55 // pred_fallthru
          _
      $region56: #{tpu_custom_call.1} parent=5 // pred_fallthru
        _
    $region6: #{tpu_custom_call.1} parent=1 // loop_footer
      %s20 = sadd.s32 1, %s16
    $region7: #{tpu_custom_call.1} parent=1 // loop_footer_branch
      %15 = sbr.rel target = $region3
    $region8: #{tpu_custom_call.1} parent=1 // loop_exit
      _
    %702 = vsyncpa [#allocation3], 1
    %s703 = scalar_lea.sflag [#allocation3], 1
    %704 = vsyncpa %s703, 1
    %705 = vsyncpa [#allocation6], 1
    %706 = vsyncpa [#allocation4], 1
    %s707 = scalar_lea.sflag [#allocation4], 1
    %708 = vsyncpa %s707, 1

</llo_original>
